<compile_context>
chip_gen: v7x
topology: tpu7x:2x2x1
jax: 0.10.0
libtpu: 0.0.40
codegen_flags: <defaults>
</compile_context>

<pallas_src>
import functools

import numpy as np
import jax
import jax.numpy as jnp
from jax import lax
from jax.experimental import pallas as pl
from jax.experimental.pallas import tpu as pltpu


def _round_up(x: int, m: int) -> int:
    return ((x + m - 1) // m) * m


def _vmem_limit_bytes(Et: int, Dp: int, Nb: int, onehot_bytes: int) -> int:
    f32 = 4
    est = (2 * Et * Dp * f32            # double-buffered efeat stream
           + 2 * Et * Dp * f32          # pass-2 output tile
           + 2 * Nb * Dp * f32          # neigh block
           + Nb * Et * (4 + onehot_bytes)   # iota + one-hot intermediates
           + 4 * Et * Dp * f32          # gathered / rev / cast temporaries
           + Nb * 128 * f32)            # degree scratch
    # >= scoped default everywhere, capped at 56 MiB for v7x headroom.
    return int(min(max(2 * est, 32 << 20), 56 << 20))


def _scatter_kernel(dst_ref, efeat_ref, neigh_ref, deg_ref, *,
                    mean, deg_col, use_deg_scratch, mm_dtype):
    """Pass 1: neigh[v] = reduce_{e: dst(e)==v} efeat[e] for one node block.

    dst_ref:   (1, Et)   int32   destination node id per edge of this tile
    efeat_ref: (Et, Dp)  float32 edge features (optionally with a ones column)
    neigh_ref: (Nb, Dp)  float32 resident accumulator / output block
    deg_ref:   (Nb, 128) float32 scratch degree accumulator (only when needed)
    """
    nb = pl.program_id(0)
    t = pl.program_id(1)
    num_t = pl.num_programs(1)
    Nb, _ = neigh_ref.shape
    Et = efeat_ref.shape[0]

    @pl.when(t == 0)
    def _init():
        neigh_ref[...] = jnp.zeros_like(neigh_ref)
        if use_deg_scratch:
            deg_ref[...] = jnp.zeros_like(deg_ref)

    # One-hot scatter matrix S[v, e] = 1 iff dst(e) == global id of row v.
    node_ids = lax.broadcasted_iota(jnp.int32, (Nb, Et), 0) + nb * Nb
    onehot = (node_ids == dst_ref[...]).astype(mm_dtype)

    neigh_ref[...] += jnp.dot(onehot, efeat_ref[...].astype(mm_dtype),
                              preferred_element_type=jnp.float32)
    if use_deg_scratch:
        # Degree via MXU as well (exact: 0/1 x 1.0 in bf16, f32 accumulate).
        deg_ref[...] += jnp.dot(onehot,
                                jnp.ones((Et, deg_ref.shape[1]), mm_dtype),
                                preferred_element_type=jnp.float32)

    if mean:
        @pl.when(t == num_t - 1)
        def _finalize():
            if use_deg_scratch:
                deg = deg_ref[:, 0:1]
            else:
                # Appended ones column already holds the in-degree.
                deg = neigh_ref[:, deg_col:deg_col + 1]
            deg = jnp.maximum(deg, 1.0)
            inv = pl.reciprocal(deg, approx=True)     # EUP slot
            inv = inv * (2.0 - deg * inv)             # Newton step 1
            inv = inv * (2.0 - deg * inv)             # Newton step 2 -> ~f32
            neigh_ref[...] = neigh_ref[...] * inv     # isolated nodes stay 0


def _gather_sub_kernel(src_ref, efeat_ref, neigh_ref, out_ref, *, mm_dtype):
    """Pass 2: out[e] = neigh[src(e)] - efeat[pair_swap(e)], node-block reduce.

    src_ref:   (1, Et)  int32
    efeat_ref: (Et, Dp) float32
    neigh_ref: (Nb, Dp) float32  (current node block, read-only)
    out_ref:   (Et, Dp) float32  resident across node blocks
    """
    nb = pl.program_id(1)
    Nb, _ = neigh_ref.shape
    Et = efeat_ref.shape[0]

    # Gather via one-hot consumed transposed by the MXU (contract dim 0 of
    # both operands -> (Et, Dp)).
    node_ids = lax.broadcasted_iota(jnp.int32, (Nb, Et), 0) + nb * Nb
    onehot = (node_ids == src_ref[...]).astype(mm_dtype)
    gathered = lax.dot_general(onehot, neigh_ref[...].astype(mm_dtype),
                               dimension_numbers=(((0,), (0,)), ((), ())),
                               preferred_element_type=jnp.float32)   # (Et, Dp)

    @pl.when(nb == 0)
    def _first():
        # Reverse-pair swap rows 2i <-> 2i+1 via sublane rolls (XLU slot)
        # plus an even/odd-row select -- no (Et, Et) permutation matmul.
        x = efeat_ref[...]
        nxt = pltpu.roll(x, Et - 1, axis=0)   # row i <- row i+1 (mod Et)
        prv = pltpu.roll(x, 1, axis=0)        # row i <- row i-1 (mod Et)
        is_even = (lax.broadcasted_iota(jnp.int32, (Et, 1), 0) % 2) == 0
        rev = jnp.where(is_even, nxt, prv)
        out_ref[...] = (gathered - rev).astype(out_ref.dtype)

    @pl.when(nb != 0)
    def _rest():
        out_ref[...] += gathered.astype(out_ref.dtype)


def edge_conv(nfeat, efeat, src, dst, num_nodes, aggregator_type="mean", *,
              edge_tile=1024, node_block=256, use_bf16_matmul=True):
    """Pallas implementation of EDGE_CONV.forward.

    nfeat: (N, node_dim) -- carried for API fidelity; never read by the module.
    efeat: (E, edge_dim), src/dst: (E,) int -- edge e goes src[e] -> dst[e].
    Edges are assumed stored as reverse pairs (2i, 2i+1), as in the module.
    """
    del nfeat  # stored as graph.ndata['h'] in the reference but never used
    num_nodes = int(num_nodes)
    E, D = efeat.shape
    assert E % 2 == 0, "edges must come in reverse pairs (2i, 2i+1)"
    if aggregator_type not in ("mean", "sum"):
        raise NotImplementedError(aggregator_type)

    mm_dtype = jnp.bfloat16 if use_bf16_matmul else jnp.float32
    mean = aggregator_type == "mean"
    # Degree column rides in a free padded lane only when one exists.
    add_deg_col = mean and (D % 128 != 0)
    use_deg_scratch = mean and not add_deg_col

    # --- padding / tiling: lane-dense, (8,128)-legal, MXU-friendly ----------
    Dp = _round_up(D + (1 if add_deg_col else 0), 128)
    Et = _round_up(max(1, min(int(edge_tile), E)), 128)   # even -> keeps pairs
    Ep = _round_up(E, Et)
    num_edge_tiles = Ep // Et

    Nb = _round_up(max(1, min(int(node_block), num_nodes + 1)), 128)
    Np = _round_up(num_nodes + 1, Nb)     # +1 dummy node absorbs padded edges
    num_node_blocks = Np // Nb

    # Host-side padding in one concatenate/pad each (no scatter chains).
    ef = efeat.astype(jnp.float32)
    if add_deg_col:
        ef = jnp.concatenate([ef, jnp.ones((E, 1), jnp.float32)], axis=1)
    ef = jnp.pad(ef, ((0, Ep - E), (0, Dp - ef.shape[1])))

    # Padded edges point at the dummy node `num_nodes`; their sums/degrees
    # only pollute that (never-read) row and their outputs are sliced off.
    dst_p = jnp.pad(jnp.asarray(dst, jnp.int32), (0, Ep - E),
                    constant_values=num_nodes)[None, :]
    src_p = jnp.pad(jnp.asarray(src, jnp.int32), (0, Ep - E),
                    constant_values=num_nodes)[None, :]

    vmem_limit = _vmem_limit_bytes(Et, Dp, Nb, 2 if use_bf16_matmul else 4)

    # --- pass 1: segment reduction, node blocks parallel, edge tiles reduce --
    neigh = pl.pallas_call(
        functools.partial(_scatter_kernel, mean=mean, deg_col=D,
                          use_deg_scratch=use_deg_scratch, mm_dtype=mm_dtype),
        out_shape=jax.ShapeDtypeStruct((Np, Dp), jnp.float32),
        grid_spec=pltpu.PrefetchScalarGridSpec(
            num_scalar_prefetch=0,
            grid=(num_node_blocks, num_edge_tiles),
            in_specs=[pl.BlockSpec((1, Et), lambda nb, t: (0, t)),
                      pl.BlockSpec((Et, Dp), lambda nb, t: (t, 0))],
            out_specs=pl.BlockSpec((Nb, Dp), lambda nb, t: (nb, 0)),
            scratch_shapes=[pltpu.VMEM((Nb, 128), jnp.float32)]),
        compiler_params=pltpu.CompilerParams(
            dimension_semantics=("parallel", "arbitrary"),
            vmem_limit_bytes=vmem_limit),
    )(dst_p, ef)

    # --- pass 2: gather + pair-swap subtract, edge tiles parallel ------------
    out_p = pl.pallas_call(
        functools.partial(_gather_sub_kernel, mm_dtype=mm_dtype),
        out_shape=jax.ShapeDtypeStruct((Ep, Dp), jnp.float32),
        grid_spec=pltpu.PrefetchScalarGridSpec(
            num_scalar_prefetch=0,
            grid=(num_edge_tiles, num_node_blocks),
            in_specs=[pl.BlockSpec((1, Et), lambda t, nb: (0, t)),
                      pl.BlockSpec((Et, Dp), lambda t, nb: (t, 0)),
                      pl.BlockSpec((Nb, Dp), lambda t, nb: (nb, 0))],
            out_specs=pl.BlockSpec((Et, Dp), lambda t, nb: (t, 0))),
        compiler_params=pltpu.CompilerParams(
            dimension_semantics=("parallel", "arbitrary"),
            vmem_limit_bytes=vmem_limit),
    )(src_p, ef, neigh)

    return out_p[:E, :D]


def edge_conv_ref(efeat, src, dst, num_nodes, aggregator_type="mean"):
    """Pure-JAX reference for correctness checking."""
    E, D = efeat.shape
    perm = np.arange(E)
    perm[0::2] += 1
    perm[1::2] -= 1
    rev = efeat[perm]
    dst = jnp.asarray(dst)
    src = jnp.asarray(src)
    sum_msg = jnp.zeros((num_nodes, D), jnp.float32).at[dst].add(
        efeat.astype(jnp.float32))
    if aggregator_type == "mean":
        deg = jnp.zeros((num_nodes,), jnp.float32).at[dst].add(1.0)
        neigh = sum_msg / jnp.maximum(deg, 1.0)[:, None]
    else:
        neigh = sum_msg
    return neigh[src] - rev


if __name__ == "__main__":
    key = jax.random.PRNGKey(0)

    def make_graph(k, num_nodes, num_pairs, node_dim, edge_dim):
        k1, k2, k3, k4 = jax.random.split(k, 4)
        u = jax.random.randint(k1, (num_pairs,), 0, num_nodes)
        v = jax.random.randint(k2, (num_pairs,), 0, num_nodes)
        # edge 2i: u -> v, edge 2i+1: v -> u (reverse pairs, as the module assumes)
        src = jnp.stack([u, v], axis=1).reshape(-1)
        dst = jnp.stack([v, u], axis=1).reshape(-1)
        nfeat = jax.random.normal(k3, (num_nodes, node_dim), jnp.float32)
        efeat = jax.random.normal(k4, (num_pairs * 2, edge_dim), jnp.float32)
        return nfeat, efeat, src, dst

    num_nodes, num_pairs, node_dim = 8, 8, 4

    # 1) edge_dim=32 (degree rides in a free padded lane), mean, bf16 MXU path
    nfeat, efeat, src, dst = make_graph(key, num_nodes, num_pairs, node_dim, 32)
    out = jax.block_until_ready(
        edge_conv(nfeat, efeat, src, dst, num_nodes, "mean"))
    ref = edge_conv_ref(efeat, src, dst, num_nodes, "mean")
    assert out.shape == (num_pairs * 2, 32)
    assert jnp.allclose(out, ref, atol=5e-2, rtol=5e-2), "bf16 mean mismatch"

    # 1b) same graph, f32 matmul path -> tight tolerance vs reference
    out32 = jax.block_until_ready(
        edge_conv(nfeat, efeat, src, dst, num_nodes, "mean",
                  use_bf16_matmul=False))
    assert jnp.allclose(out32, ref, atol=1e-4, rtol=1e-4), "f32 mean mismatch"

    # 2) edge_dim=128 (D % 128 == 0 -> degree via separate scratch matmul)
    nfeat2, efeat2, src2, dst2 = make_graph(
        jax.random.fold_in(key, 1), num_nodes, num_pairs, node_dim, 128)
    out2 = jax.block_until_ready(
        edge_conv(nfeat2, efeat2, src2, dst2, num_nodes, "mean"))
    ref2 = edge_conv_ref(efeat2, src2, dst2, num_nodes, "mean")
    assert jnp.allclose(out2, ref2, atol=5e-2, rtol=5e-2), "deg-scratch mismatch"

    # 3) sum aggregator
    out3 = jax.block_until_ready(
        edge_conv(nfeat, efeat, src, dst, num_nodes, "sum"))
    ref3 = edge_conv_ref(efeat, src, dst, num_nodes, "sum")
    assert jnp.allclose(out3, ref3, atol=5e-2, rtol=5e-2), "sum mismatch"

    print("KERNEL_OK")
</pallas_src>

<mosaic_0001>
module attributes {stable_mosaic.version = 11 : i64} {
  func.func @_scatter_kernel(%arg0: i32, %arg1: i32, %arg2: memref<1x128xi32, #tpu.memory_space<vmem>>, %arg3: memref<128x128xf32, #tpu.memory_space<vmem>>, %arg4: memref<128x128xf32, #tpu.memory_space<vmem>>, %arg5: memref<128x128xf32, #tpu.memory_space<vmem>>) attributes {dimension_semantics = [#tpu.dimension_semantics<parallel>, #tpu.dimension_semantics<arbitrary>], iteration_bounds = array<i64: 1, 1>, scalar_prefetch = 0 : i64, scratch_operands = 1 : i64, tpu.core_type = #tpu.core_type<tc>, window_params = [{transform_indices = @transform_0, window_bounds = array<i64: 1, 128>}, {transform_indices = @transform_1, window_bounds = array<i64: 128, 128>}, {transform_indices = @transform_2, window_bounds = array<i64: 128, 128>}]} {
    %c0_i32 = arith.constant 0 : i32
    %0 = arith.cmpi eq, %arg1, %c0_i32 : i32
    %1 = arith.extui %0 : i1 to i32
    %c0_i32_0 = arith.constant 0 : i32
    %2 = arith.cmpi ne, %1, %c0_i32_0 : i32
    scf.if %2 {
      %cst_10 = arith.constant 0.000000e+00 : f32
      %22 = vector.broadcast %cst_10 : f32 to vector<128x128xf32>
      %c0_11 = arith.constant 0 : index
      %c0_12 = arith.constant 0 : index
      %23 = vector.load %arg4[%c0_11, %c0_12] : memref<128x128xf32, #tpu.memory_space<vmem>>, vector<128x128xf32>
      tpu.vector_store %arg4[%c0_11, %c0_12], %22 {strides = array<i32>} : memref<128x128xf32, #tpu.memory_space<vmem>>, vector<128x128xf32>,
    } else {
    }
    %3 = tpu.iota {dimensions = array<i32: 0>} : vector<128x128xi32>
    %c128_i32 = arith.constant 128 : i32
    %4 = arith.muli %arg0, %c128_i32 : i32
    %5 = vector.broadcast %4 : i32 to vector<128x128xi32>
    %6 = arith.addi %3, %5 : vector<128x128xi32>
    %c0 = arith.constant 0 : index
    %c0_1 = arith.constant 0 : index
    %7 = vector.load %arg2[%c0, %c0_1] : memref<1x128xi32, #tpu.memory_space<vmem>>, vector<1x128xi32>
    %8 = vector.broadcast %7 : vector<1x128xi32> to vector<128x128xi32>
    %9 = arith.cmpi eq, %6, %8 : vector<128x128xi32>
    %10 = arith.extui %9 : vector<128x128xi1> to vector<128x128xi32>
    %11 = arith.sitofp %10 : vector<128x128xi32> to vector<128x128xf32>
    %12 = arith.truncf %11 : vector<128x128xf32> to vector<128x128xbf16>
    %c0_2 = arith.constant 0 : index
    %c0_3 = arith.constant 0 : index
    %13 = vector.load %arg4[%c0_2, %c0_3] : memref<128x128xf32, #tpu.memory_space<vmem>>, vector<128x128xf32>
    %c0_4 = arith.constant 0 : index
    %c0_5 = arith.constant 0 : index
    %14 = vector.load %arg3[%c0_4, %c0_5] : memref<128x128xf32, #tpu.memory_space<vmem>>, vector<128x128xf32>
    %15 = arith.truncf %14 : vector<128x128xf32> to vector<128x128xbf16>
    %cst = arith.constant dense<0.000000e+00> : vector<128x128xf32>
    %16 = tpu.matmul %12, %15, %cst {dimension_numbers = #tpu.dot_dimension_numbers<[1], [0], [0], [1], [0, 0, 1, 1], [], []>} : vector<128x128xbf16>, vector<128x128xbf16>, vector<128x128xf32> -> vector<128x128xf32>
    %17 = arith.addf %13, %16 : vector<128x128xf32>
    %c0_6 = arith.constant 0 : index
    %c0_7 = arith.constant 0 : index
    %18 = vector.load %arg4[%c0_6, %c0_7] : memref<128x128xf32, #tpu.memory_space<vmem>>, vector<128x128xf32>
    tpu.vector_store %arg4[%c0_6, %c0_7], %17 {strides = array<i32>} : memref<128x128xf32, #tpu.memory_space<vmem>>, vector<128x128xf32>,
    %c0_i32_8 = arith.constant 0 : i32
    %19 = arith.cmpi eq, %arg1, %c0_i32_8 : i32
    %20 = arith.extui %19 : i1 to i32
    %c0_i32_9 = arith.constant 0 : i32
    %21 = arith.cmpi ne, %20, %c0_i32_9 : i32
    scf.if %21 {
      %c0_10 = arith.constant 0 : index
      %c32 = arith.constant 32 : index
      %22 = vector.load %arg4[%c0_10, %c32] : memref<128x128xf32, #tpu.memory_space<vmem>>, vector<128x1xf32>
      %cst_11 = arith.constant 1.000000e+00 : f32
      %23 = vector.broadcast %cst_11 : f32 to vector<128x1xf32>
      %24 = arith.maximumf %22, %23 : vector<128x1xf32>
      %25 = tpu.reciprocal %24 {approx = true} : vector<128x1xf32> -> vector<128x1xf32>
      %26 = arith.mulf %24, %25 : vector<128x1xf32>
      %cst_12 = arith.constant 2.000000e+00 : f32
      %27 = vector.broadcast %cst_12 : f32 to vector<128x1xf32>
      %28 = arith.subf %27, %26 : vector<128x1xf32>
      %29 = arith.mulf %25, %28 : vector<128x1xf32>
      %30 = arith.mulf %24, %29 : vector<128x1xf32>
      %cst_13 = arith.constant 2.000000e+00 : f32
      %31 = vector.broadcast %cst_13 : f32 to vector<128x1xf32>
      %32 = arith.subf %31, %30 : vector<128x1xf32>
      %33 = arith.mulf %29, %32 : vector<128x1xf32>
      %c0_14 = arith.constant 0 : index
      %c0_15 = arith.constant 0 : index
      %34 = vector.load %arg4[%c0_14, %c0_15] : memref<128x128xf32, #tpu.memory_space<vmem>>, vector<128x128xf32>
      %35 = vector.broadcast %33 : vector<128x1xf32> to vector<128x128xf32>
      %36 = arith.mulf %34, %35 : vector<128x128xf32>
      %c0_16 = arith.constant 0 : index
      %c0_17 = arith.constant 0 : index
      %37 = vector.load %arg4[%c0_16, %c0_17] : memref<128x128xf32, #tpu.memory_space<vmem>>, vector<128x128xf32>
      tpu.vector_store %arg4[%c0_16, %c0_17], %36 {strides = array<i32>} : memref<128x128xf32, #tpu.memory_space<vmem>>, vector<128x128xf32>,
    } else {
    }
    return
  }
  func.func @transform_0(%arg0: i32, %arg1: i32) -> (i32, i32) {
    %c0_i32 = arith.constant 0 : i32
    %c0_i32_0 = arith.constant 0 : i32
    return %c0_i32, %arg1 : i32, i32
  }
  func.func @transform_1(%arg0: i32, %arg1: i32) -> (i32, i32) {
    %c0_i32 = arith.constant 0 : i32
    %c0_i32_0 = arith.constant 0 : i32
    return %arg1, %c0_i32 : i32, i32
  }
  func.func @transform_2(%arg0: i32, %arg1: i32) -> (i32, i32) {
    %c0_i32 = arith.constant 0 : i32
    %c0_i32_0 = arith.constant 0 : i32
    return %arg0, %c0_i32 : i32, i32
  }
}

</mosaic_0001>

<llo_original>
// kernel: tpu_custom_call.1
$region0: #{tpu_custom_call.1}
  #allocation0 [shape = 'u32[]', space=smem, size = 0x4, offset = 0x4, fixed_abs, tag = 'smem constant byte address 0x4 - core index']
  #allocation1 [shape = 'u32[144,128]{1,0:T(1,128)}', space=vmem, size = 0x12000, scoped, tag = 'internal scratch']
  #allocation2 [shape = 'f32[128,128]{1,0:T(8,128)}', space=vmem, size = 0x10000, scoped, tag = 'scratch operand']
  %s0 = inlined_call_operand.hbm [shape: s32[1,128], index: 0, kind: input, shape index: {}]
  %s1 = inlined_call_operand.hbm [shape: f32[128,128], index: 1, kind: input, shape index: {}]
  %s2 = inlined_call_operand.hbm [shape: f32[128,128], index: 2, kind: output, shape index: {}]
  %s3 = sld [smem:[#allocation0]]
  $region34: #{tpu_custom_call.1} parent=0
    _
  %s5 = ssub.s32 1, %s3
  %s6 = scalar_select 0, %s5, %s3
  $region1: #{tpu_custom_call.1} parent=0
    #allocation3 [shape = 'u8[512]{0}', space=vmem, size = 0x400, scoped, tag = 'input window, operand 0, single buffered']
    #allocation4 [shape = 's32[1]{0}', space=sflag, size = 0x4, scoped, tag = 'scoped memory for tpu_custom_call.1']
    #allocation5 [shape = 's32[1]{0}', space=sflag, size = 0x4, scoped, tag = 'scoped memory for tpu_custom_call.1']
    #allocation6 [shape = 'u8[65536]{0}', space=vmem, size = 0x10000, scoped, tag = 'input window, operand 1, single buffered']
    #allocation7 [shape = 's32[1]{0}', space=sflag, size = 0x4, scoped, tag = 'scoped memory for tpu_custom_call.1']
    #allocation8 [shape = 'u8[65536]{0}', space=vmem, size = 0x10000, scoped, tag = 'output window, operand 0, single buffered']
    %7 = vsyncpa [#allocation4], 0
    %8 = vsyncpa [#allocation7], 0
    %9 = vsyncpa [#allocation5], 0
    // Predicated region
    $region2: #{tpu_custom_call.1} parent=1 // pred_check
      _
    $region3: #{tpu_custom_call.1} parent=1 // pred_check_branch
      %11 = sbr.rel (0) target = $region5
    $region4: #{tpu_custom_call.1} parent=1 // pred_region
      %s13 = ssub.s32 16, 16
      %14 = vsyncadd [#allocation4], %s13
      %s16 = sshll.u32 [#allocation3], 4
      %s17 = int_to_ptr.vmem [resolvable:$true] %s16
      %19 = dma.hbm_to_vmem [thread:$0]  %s0, 16, %s17, [#allocation4]
    $region5: #{tpu_custom_call.1} parent=1 // pred_fallthru
      _
    // Predicated region
    $region6: #{tpu_custom_call.1} parent=1 // pred_check
      _
    $region7: #{tpu_custom_call.1} parent=1 // pred_check_branch
      %21 = sbr.rel (0) target = $region9
    $region8: #{tpu_custom_call.1} parent=1 // pred_region
      %s23 = ssub.s32 2048, 2048
      %24 = vsyncadd [#allocation7], %s23
      %s25 = sshll.u32 [#allocation6], 4
      %s26 = int_to_ptr.vmem [resolvable:$true] %s25
      %31 = dma.hbm_to_vmem [thread:$0]  %s1, 2048, %s26, [#allocation7], 128, 128, 8
    $region9: #{tpu_custom_call.1} parent=1 // pred_fallthru
      _
    // Predicated region
    $region10: #{tpu_custom_call.1} parent=1 // pred_check
      _
    $region11: #{tpu_custom_call.1} parent=1 // pred_check_branch
      %33 = sbr.rel (0) target = $region13
    $region12: #{tpu_custom_call.1} parent=1 // pred_region
      %34 = dma.done [#allocation4], 16
    $region13: #{tpu_custom_call.1} parent=1 // pred_fallthru
      _
    // Predicated region
    $region14: #{tpu_custom_call.1} parent=1 // pred_check
      _
    $region15: #{tpu_custom_call.1} parent=1 // pred_check_branch
      %36 = sbr.rel (0) target = $region17
    $region16: #{tpu_custom_call.1} parent=1 // pred_region
      %37 = dma.done [#allocation7], 2048
    $region17: #{tpu_custom_call.1} parent=1 // pred_fallthru
      _
    %p39 = scmp.eq.s32.totalorder 0, 0
    // Predicated region
    $region18: #{tpu_custom_call.1} parent=1 // pred_check
      %p40 = pneg %p39
    $region19: #{tpu_custom_call.1} parent=1 // pred_check_branch
      %42 = sbr.rel (%p40) target = $region21
    $region20: #{tpu_custom_call.1} parent=1 // pred_region
      %43 = vst [vmem:[#allocation8] sm:$0xff] 0.0
      %44 = vst [vmem:[#allocation8 + $0x8] sm:$0xff] 0.0
      %45 = vst [vmem:[#allocation8 + $0x10] sm:$0xff] 0.0
      %46 = vst [vmem:[#allocation8 + $0x18] sm:$0xff] 0.0
      %47 = vst [vmem:[#allocation8 + $0x20] sm:$0xff] 0.0
      %48 = vst [vmem:[#allocation8 + $0x28] sm:$0xff] 0.0
      %49 = vst [vmem:[#allocation8 + $0x30] sm:$0xff] 0.0
      %50 = vst [vmem:[#allocation8 + $0x38] sm:$0xff] 0.0
      %51 = vst [vmem:[#allocation8 + $0x40] sm:$0xff] 0.0
      %52 = vst [vmem:[#allocation8 + $0x48] sm:$0xff] 0.0
      %53 = vst [vmem:[#allocation8 + $0x50] sm:$0xff] 0.0
      %54 = vst [vmem:[#allocation8 + $0x58] sm:$0xff] 0.0
      %55 = vst [vmem:[#allocation8 + $0x60] sm:$0xff] 0.0
      %56 = vst [vmem:[#allocation8 + $0x68] sm:$0xff] 0.0
      %57 = vst [vmem:[#allocation8 + $0x70] sm:$0xff] 0.0
      %58 = vst [vmem:[#allocation8 + $0x78] sm:$0xff] 0.0
    $region21: #{tpu_custom_call.1} parent=1 // pred_fallthru
      _
    %v59 = vlaneseq
    %v60 = vshrl.u32 %v59, 7
    %v61 = vadd.s32 %v60, 8
    %v62 = vadd.s32 %v60, 16
    %v63 = vadd.s32 %v60, 24
    %v64 = vadd.s32 %v60, 32
    %v65 = vadd.s32 %v60, 40
    %v66 = vadd.s32 %v60, 48
    %v67 = vadd.s32 %v60, 56
    %v68 = vadd.s32 %v60, 64
    %v69 = vadd.s32 %v60, 72
    %v70 = vadd.s32 %v60, 80
    %v71 = vadd.s32 %v60, 88
    %v72 = vadd.s32 %v60, 96
    %v73 = vadd.s32 %v60, 104
    %v74 = vadd.s32 %v60, 112
    %v75 = vadd.s32 %v60, 120
    %s76 = smul.u32 0, 128
    %v77 = vstv %s76
    %v78 = vadd.s32 %v60, %v77
    %v79 = vadd.s32 %v61, %v77
    %v80 = vadd.s32 %v62, %v77
    %v81 = vadd.s32 %v63, %v77
    %v82 = vadd.s32 %v64, %v77
    %v83 = vadd.s32 %v65, %v77
    %v84 = vadd.s32 %v66, %v77
    %v85 = vadd.s32 %v67, %v77
    %v86 = vadd.s32 %v68, %v77
    %v87 = vadd.s32 %v69, %v77
    %v88 = vadd.s32 %v70, %v77
    %v89 = vadd.s32 %v71, %v77
    %v90 = vadd.s32 %v72, %v77
    %v91 = vadd.s32 %v73, %v77
    %v92 = vadd.s32 %v74, %v77
    %v93 = vadd.s32 %v75, %v77
    %v94 = vld [vmem:[#allocation3] sm:$0x1]
    %v95 = vlaneseq
    %v96 = vshrl.u32 %v95, 7
    %v97 = vsub.s32 0, %v96
    %v98 = vrot.slane %v94, %v97
    %vm99 = vcmp.eq.s32.totalorder %v78, %v98
    %vm100 = vcmp.eq.s32.totalorder %v79, %v98
    %vm101 = vcmp.eq.s32.totalorder %v80, %v98
    %vm102 = vcmp.eq.s32.totalorder %v81, %v98
    %vm103 = vcmp.eq.s32.totalorder %v82, %v98
    %vm104 = vcmp.eq.s32.totalorder %v83, %v98
    %vm105 = vcmp.eq.s32.totalorder %v84, %v98
    %vm106 = vcmp.eq.s32.totalorder %v85, %v98
    %vm107 = vcmp.eq.s32.totalorder %v86, %v98
    %vm108 = vcmp.eq.s32.totalorder %v87, %v98
    %vm109 = vcmp.eq.s32.totalorder %v88, %v98
    %vm110 = vcmp.eq.s32.totalorder %v89, %v98
    %vm111 = vcmp.eq.s32.totalorder %v90, %v98
    %vm112 = vcmp.eq.s32.totalorder %v91, %v98
    %vm113 = vcmp.eq.s32.totalorder %v92, %v98
    %vm114 = vcmp.eq.s32.totalorder %v93, %v98
    %v115 = vsel %vm99, 1, 0
    %v116 = vsel %vm100, 1, 0
    %v117 = vsel %vm101, 1, 0
    %v118 = vsel %vm102, 1, 0
    %v119 = vsel %vm103, 1, 0
    %v120 = vsel %vm104, 1, 0
    %v121 = vsel %vm105, 1, 0
    %v122 = vsel %vm106, 1, 0
    %v123 = vsel %vm107, 1, 0
    %v124 = vsel %vm108, 1, 0
    %v125 = vsel %vm109, 1, 0
    %v126 = vsel %vm110, 1, 0
    %v127 = vsel %vm111, 1, 0
    %v128 = vsel %vm112, 1, 0
    %v129 = vsel %vm113, 1, 0
    %v130 = vsel %vm114, 1, 0
    %v131 = vcvt.s32.f32 %v115
    %v132 = vcvt.s32.f32 %v116
    %v133 = vcvt.s32.f32 %v117
    %v134 = vcvt.s32.f32 %v118
    %v135 = vcvt.s32.f32 %v119
    %v136 = vcvt.s32.f32 %v120
    %v137 = vcvt.s32.f32 %v121
    %v138 = vcvt.s32.f32 %v122
    %v139 = vcvt.s32.f32 %v123
    %v140 = vcvt.s32.f32 %v124
    %v141 = vcvt.s32.f32 %v125
    %v142 = vcvt.s32.f32 %v126
    %v143 = vcvt.s32.f32 %v127
    %v144 = vcvt.s32.f32 %v128
    %v145 = vcvt.s32.f32 %v129
    %v146 = vcvt.s32.f32 %v130
    %v147 = vpack.c.bf16 %v132, %v131
    %v148 = vpack.c.bf16 %v134, %v133
    %v149 = vpack.c.bf16 %v136, %v135
    %v150 = vpack.c.bf16 %v138, %v137
    %v151 = vpack.c.bf16 %v140, %v139
    %v152 = vpack.c.bf16 %v142, %v141
    %v153 = vpack.c.bf16 %v144, %v143
    %v154 = vpack.c.bf16 %v146, %v145
    %v155 = vld [vmem:[#allocation8] sm:$0xff]
    %v156 = vld [vmem:[#allocation8 + $0x8] sm:$0xff]
    %v157 = vld [vmem:[#allocation8 + $0x10] sm:$0xff]
    %v158 = vld [vmem:[#allocation8 + $0x18] sm:$0xff]
    %v159 = vld [vmem:[#allocation8 + $0x20] sm:$0xff]
    %v160 = vld [vmem:[#allocation8 + $0x28] sm:$0xff]
    %v161 = vld [vmem:[#allocation8 + $0x30] sm:$0xff]
    %v162 = vld [vmem:[#allocation8 + $0x38] sm:$0xff]
    %v163 = vld [vmem:[#allocation8 + $0x40] sm:$0xff]
    %v164 = vld [vmem:[#allocation8 + $0x48] sm:$0xff]
    %v165 = vld [vmem:[#allocation8 + $0x50] sm:$0xff]
    %v166 = vld [vmem:[#allocation8 + $0x58] sm:$0xff]
    %v167 = vld [vmem:[#allocation8 + $0x60] sm:$0xff]
    %v168 = vld [vmem:[#allocation8 + $0x68] sm:$0xff]
    %v169 = vld [vmem:[#allocation8 + $0x70] sm:$0xff]
    %v170 = vld [vmem:[#allocation8 + $0x78] sm:$0xff]
    %v171 = vld [vmem:[#allocation6] sm:$0xff]
    %v172 = vld [vmem:[#allocation6 + $0x8] sm:$0xff]
    %v173 = vld [vmem:[#allocation6 + $0x10] sm:$0xff]
    %v174 = vld [vmem:[#allocation6 + $0x18] sm:$0xff]
    %v175 = vld [vmem:[#allocation6 + $0x20] sm:$0xff]
    %v176 = vld [vmem:[#allocation6 + $0x28] sm:$0xff]
    %v177 = vld [vmem:[#allocation6 + $0x30] sm:$0xff]
    %v178 = vld [vmem:[#allocation6 + $0x38] sm:$0xff]
    %v179 = vld [vmem:[#allocation6 + $0x40] sm:$0xff]
    %v180 = vld [vmem:[#allocation6 + $0x48] sm:$0xff]
    %v181 = vld [vmem:[#allocation6 + $0x50] sm:$0xff]
    %v182 = vld [vmem:[#allocation6 + $0x58] sm:$0xff]
    %v183 = vld [vmem:[#allocation6 + $0x60] sm:$0xff]
    %v184 = vld [vmem:[#allocation6 + $0x68] sm:$0xff]
    %v185 = vld [vmem:[#allocation6 + $0x70] sm:$0xff]
    %v186 = vld [vmem:[#allocation6 + $0x78] sm:$0xff]
    %v187 = vpack.c.bf16 %v172, %v171
    %v188 = vpack.c.bf16 %v174, %v173
    %v189 = vpack.c.bf16 %v176, %v175
    %v190 = vpack.c.bf16 %v178, %v177
    %v191 = vpack.c.bf16 %v180, %v179
    %v192 = vpack.c.bf16 %v182, %v181
    %v193 = vpack.c.bf16 %v184, %v183
    %v194 = vpack.c.bf16 %v186, %v185
    %195 = vmatprep.subr.bf16.mxu0 0
    %196 = vmatpush1.bf16.msra.mxu0 %v187
    %197 = vmatprep.subr.bf16.mxu0 0
    %198 = vmatpush1.bf16.msra.mxu0 %v188
    %199 = vmatprep.subr.bf16.mxu0 0
    %200 = vmatpush1.bf16.msra.mxu0 %v189
    %201 = vmatprep.subr.bf16.mxu0 0
    %202 = vmatpush1.bf16.msra.mxu0 %v190
    %203 = vmatprep.subr.bf16.mxu0 0
    %204 = vmatpush1.bf16.msra.mxu0 %v191
    %205 = vmatprep.subr.bf16.mxu0 0
    %206 = vmatpush1.bf16.msra.mxu0 %v192
    %207 = vmatprep.subr.bf16.mxu0 0
    %208 = vmatpush1.bf16.msra.mxu0 %v193
    %209 = vmatprep.subr.bf16.mxu0 0
    %210 = vmatpush1.bf16.msra.mxu0 %v194
    %211 = vmatprep.subr.bf16.mxu0 0
    %212 = vmatpush1.bf16.msra.mxu0 0
    %213 = vmatprep.subr.bf16.mxu0 0
    %214 = vmatpush1.bf16.msra.mxu0 0
    %215 = vmatprep.subr.bf16.mxu0 0
    %216 = vmatpush1.bf16.msra.mxu0 0
    %217 = vmatprep.subr.bf16.mxu0 0
    %218 = vmatpush1.bf16.msra.mxu0 0
    %219 = vmatprep.subr.bf16.mxu0 0
    %220 = vmatpush1.bf16.msra.mxu0 0
    %221 = vmatprep.subr.bf16.mxu0 0
    %222 = vmatpush1.bf16.msra.mxu0 0
    %223 = vmatprep.subr.bf16.mxu0 0
    %224 = vmatpush1.bf16.msra.mxu0 0
    %225 = vmatprep.subr.bf16.mxu0 0
    %226 = vmatpush1.bf16.msra.mxu0 0
    %227 = vmatprep.mubr.bf16.mxu0 0
    %228 = vmatmul.mubr.bf16.gmra.mrb[0].mxu0 %v147
    %v229 = vpop.f32.mrb[0].mxu0
    %v230 = vadd.f32 0.0, %v229
    %v231 = vpop.f32.mrb[0].mxu0
    %v232 = vpop.f32.mrb[0].mxu0
    %v233 = vadd.f32 0.0, %v232
    %v234 = vpop.f32.mrb[0].mxu0
    %235 = vmatprep.mubr.bf16.mxu0 0
    %236 = vmatmul.mubr.bf16.gmra.mrb[0].mxu0 %v148
    %v237 = vpop.f32.mrb[0].mxu0
    %v238 = vadd.f32 0.0, %v237
    %v239 = vpop.f32.mrb[0].mxu0
    %v240 = vpop.f32.mrb[0].mxu0
    %v241 = vadd.f32 0.0, %v240
    %v242 = vpop.f32.mrb[0].mxu0
    %243 = vmatprep.mubr.bf16.mxu0 0
    %244 = vmatmul.mubr.bf16.gmra.mrb[0].mxu0 %v149
    %v245 = vpop.f32.mrb[0].mxu0
    %v246 = vadd.f32 0.0, %v245
    %v247 = vpop.f32.mrb[0].mxu0
    %v248 = vpop.f32.mrb[0].mxu0
    %v249 = vadd.f32 0.0, %v248
    %v250 = vpop.f32.mrb[0].mxu0
    %251 = vmatprep.mubr.bf16.mxu0 0
    %252 = vmatmul.mubr.bf16.gmra.mrb[0].mxu0 %v150
    %v253 = vpop.f32.mrb[0].mxu0
    %v254 = vadd.f32 0.0, %v253
    %v255 = vpop.f32.mrb[0].mxu0
    %v256 = vpop.f32.mrb[0].mxu0
    %v257 = vadd.f32 0.0, %v256
    %v258 = vpop.f32.mrb[0].mxu0
    %259 = vmatprep.mubr.bf16.mxu0 0
    %260 = vmatmul.mubr.bf16.gmra.mrb[0].mxu0 %v151
    %v261 = vpop.f32.mrb[0].mxu0
    %v262 = vadd.f32 0.0, %v261
    %v263 = vpop.f32.mrb[0].mxu0
    %v264 = vpop.f32.mrb[0].mxu0
    %v265 = vadd.f32 0.0, %v264
    %v266 = vpop.f32.mrb[0].mxu0
    %267 = vmatprep.mubr.bf16.mxu0 0
    %268 = vmatmul.mubr.bf16.gmra.mrb[0].mxu0 %v152
    %v269 = vpop.f32.mrb[0].mxu0
    %v270 = vadd.f32 0.0, %v269
    %v271 = vpop.f32.mrb[0].mxu0
    %v272 = vpop.f32.mrb[0].mxu0
    %v273 = vadd.f32 0.0, %v272
    %v274 = vpop.f32.mrb[0].mxu0
    %275 = vmatprep.mubr.bf16.mxu0 0
    %276 = vmatmul.mubr.bf16.gmra.mrb[0].mxu0 %v153
    %v277 = vpop.f32.mrb[0].mxu0
    %v278 = vadd.f32 0.0, %v277
    %v279 = vpop.f32.mrb[0].mxu0
    %v280 = vpop.f32.mrb[0].mxu0
    %v281 = vadd.f32 0.0, %v280
    %v282 = vpop.f32.mrb[0].mxu0
    %283 = vmatprep.mubr.bf16.mxu0 0
    %284 = vmatmul.mubr.bf16.gmra.mrb[0].mxu0 %v154
    %v285 = vpop.f32.mrb[0].mxu0
    %v286 = vadd.f32 0.0, %v285
    %v287 = vpop.f32.mrb[0].mxu0
    %v288 = vpop.f32.mrb[0].mxu0
    %v289 = vadd.f32 0.0, %v288
    %v290 = vpop.f32.mrb[0].mxu0
    %291 = vdwg.mxu0
    %v292 = vadd.f32 %v155, %v230
    %v293 = vadd.f32 %v156, %v233
    %v294 = vadd.f32 %v157, %v238
    %v295 = vadd.f32 %v158, %v241
    %v296 = vadd.f32 %v159, %v246
    %v297 = vadd.f32 %v160, %v249
    %v298 = vadd.f32 %v161, %v254
    %v299 = vadd.f32 %v162, %v257
    %v300 = vadd.f32 %v163, %v262
    %v301 = vadd.f32 %v164, %v265
    %v302 = vadd.f32 %v165, %v270
    %v303 = vadd.f32 %v166, %v273
    %v304 = vadd.f32 %v167, %v278
    %v305 = vadd.f32 %v168, %v281
    %v306 = vadd.f32 %v169, %v286
    %v307 = vadd.f32 %v170, %v289
    %308 = vst [vmem:[#allocation8] sm:$0xff] %v292
    %309 = vst [vmem:[#allocation8 + $0x8] sm:$0xff] %v293
    %310 = vst [vmem:[#allocation8 + $0x10] sm:$0xff] %v294
    %311 = vst [vmem:[#allocation8 + $0x18] sm:$0xff] %v295
    %312 = vst [vmem:[#allocation8 + $0x20] sm:$0xff] %v296
    %313 = vst [vmem:[#allocation8 + $0x28] sm:$0xff] %v297
    %314 = vst [vmem:[#allocation8 + $0x30] sm:$0xff] %v298
    %315 = vst [vmem:[#allocation8 + $0x38] sm:$0xff] %v299
    %316 = vst [vmem:[#allocation8 + $0x40] sm:$0xff] %v300
    %317 = vst [vmem:[#allocation8 + $0x48] sm:$0xff] %v301
    %318 = vst [vmem:[#allocation8 + $0x50] sm:$0xff] %v302
    %319 = vst [vmem:[#allocation8 + $0x58] sm:$0xff] %v303
    %320 = vst [vmem:[#allocation8 + $0x60] sm:$0xff] %v304
    %321 = vst [vmem:[#allocation8 + $0x68] sm:$0xff] %v305
    %322 = vst [vmem:[#allocation8 + $0x70] sm:$0xff] %v306
    %323 = vst [vmem:[#allocation8 + $0x78] sm:$0xff] %v307
    // Predicated region
    $region22: #{tpu_custom_call.1} parent=1 // pred_check
      %p324 = pneg %p39
    $region23: #{tpu_custom_call.1} parent=1 // pred_check_branch
      %326 = sbr.rel (%p324) target = $region25
    $region24: #{tpu_custom_call.1} parent=1 // pred_region
      %v327 = vld [vmem:[#allocation8] sm:$0xff]
      %v328 = vld [vmem:[#allocation8 + $0x8] sm:$0xff]
      %v329 = vld [vmem:[#allocation8 + $0x10] sm:$0xff]
      %v330 = vld [vmem:[#allocation8 + $0x18] sm:$0xff]
      %v331 = vld [vmem:[#allocation8 + $0x20] sm:$0xff]
      %v332 = vld [vmem:[#allocation8 + $0x28] sm:$0xff]
      %v333 = vld [vmem:[#allocation8 + $0x30] sm:$0xff]
      %v334 = vld [vmem:[#allocation8 + $0x38] sm:$0xff]
      %v335 = vld [vmem:[#allocation8 + $0x40] sm:$0xff]
      %v336 = vld [vmem:[#allocation8 + $0x48] sm:$0xff]
      %v337 = vld [vmem:[#allocation8 + $0x50] sm:$0xff]
      %v338 = vld [vmem:[#allocation8 + $0x58] sm:$0xff]
      %v339 = vld [vmem:[#allocation8 + $0x60] sm:$0xff]
      %v340 = vld [vmem:[#allocation8 + $0x68] sm:$0xff]
      %v341 = vld [vmem:[#allocation8 + $0x70] sm:$0xff]
      %v342 = vld [vmem:[#allocation8 + $0x78] sm:$0xff]
      %v343 = vmax.f32 %v327, 1.0
      %v344 = vmax.f32 %v328, 1.0
      %v345 = vmax.f32 %v329, 1.0
      %v346 = vmax.f32 %v330, 1.0
      %v347 = vmax.f32 %v331, 1.0
      %v348 = vmax.f32 %v332, 1.0
      %v349 = vmax.f32 %v333, 1.0
      %v350 = vmax.f32 %v334, 1.0
      %v351 = vmax.f32 %v335, 1.0
      %v352 = vmax.f32 %v336, 1.0
      %v353 = vmax.f32 %v337, 1.0
      %v354 = vmax.f32 %v338, 1.0
      %v355 = vmax.f32 %v339, 1.0
      %v356 = vmax.f32 %v340, 1.0
      %v357 = vmax.f32 %v341, 1.0
      %v358 = vmax.f32 %v342, 1.0
      %v359 = vrcp.pop %v343
      %v360 = vrcp.pop %v344
      %v361 = vrcp.pop %v345
      %v362 = vrcp.pop %v346
      %v363 = vrcp.pop %v347
      %v364 = vrcp.pop %v348
      %v365 = vrcp.pop %v349
      %v366 = vrcp.pop %v350
      %v367 = vrcp.pop %v351
      %v368 = vrcp.pop %v352
      %v369 = vrcp.pop %v353
      %v370 = vrcp.pop %v354
      %v371 = vrcp.pop %v355
      %v372 = vrcp.pop %v356
      %v373 = vrcp.pop %v357
      %v374 = vrcp.pop %v358
      %v375 = vmul.f32 %v343, %v359
      %v376 = vmul.f32 %v344, %v360
      %v377 = vmul.f32 %v345, %v361
      %v378 = vmul.f32 %v346, %v362
      %v379 = vmul.f32 %v347, %v363
      %v380 = vmul.f32 %v348, %v364
      %v381 = vmul.f32 %v349, %v365
      %v382 = vmul.f32 %v350, %v366
      %v383 = vmul.f32 %v351, %v367
      %v384 = vmul.f32 %v352, %v368
      %v385 = vmul.f32 %v353, %v369
      %v386 = vmul.f32 %v354, %v370
      %v387 = vmul.f32 %v355, %v371
      %v388 = vmul.f32 %v356, %v372
      %v389 = vmul.f32 %v357, %v373
      %v390 = vmul.f32 %v358, %v374
      %v391 = vsub.f32 2.0, %v375
      %v392 = vsub.f32 2.0, %v376
      %v393 = vsub.f32 2.0, %v377
      %v394 = vsub.f32 2.0, %v378
      %v395 = vsub.f32 2.0, %v379
      %v396 = vsub.f32 2.0, %v380
      %v397 = vsub.f32 2.0, %v381
      %v398 = vsub.f32 2.0, %v382
      %v399 = vsub.f32 2.0, %v383
      %v400 = vsub.f32 2.0, %v384
      %v401 = vsub.f32 2.0, %v385
      %v402 = vsub.f32 2.0, %v386
      %v403 = vsub.f32 2.0, %v387
      %v404 = vsub.f32 2.0, %v388
      %v405 = vsub.f32 2.0, %v389
      %v406 = vsub.f32 2.0, %v390
      %v407 = vmul.f32 %v359, %v391
      %v408 = vmul.f32 %v360, %v392
      %v409 = vmul.f32 %v361, %v393
      %v410 = vmul.f32 %v362, %v394
      %v411 = vmul.f32 %v363, %v395
      %v412 = vmul.f32 %v364, %v396
      %v413 = vmul.f32 %v365, %v397
      %v414 = vmul.f32 %v366, %v398
      %v415 = vmul.f32 %v367, %v399
      %v416 = vmul.f32 %v368, %v400
      %v417 = vmul.f32 %v369, %v401
      %v418 = vmul.f32 %v370, %v402
      %v419 = vmul.f32 %v371, %v403
      %v420 = vmul.f32 %v372, %v404
      %v421 = vmul.f32 %v373, %v405
      %v422 = vmul.f32 %v374, %v406
      %v423 = vmul.f32 %v343, %v407
      %v424 = vmul.f32 %v344, %v408
      %v425 = vmul.f32 %v345, %v409
      %v426 = vmul.f32 %v346, %v410
      %v427 = vmul.f32 %v347, %v411
      %v428 = vmul.f32 %v348, %v412
      %v429 = vmul.f32 %v349, %v413
      %v430 = vmul.f32 %v350, %v414
      %v431 = vmul.f32 %v351, %v415
      %v432 = vmul.f32 %v352, %v416
      %v433 = vmul.f32 %v353, %v417
      %v434 = vmul.f32 %v354, %v418
      %v435 = vmul.f32 %v355, %v419
      %v436 = vmul.f32 %v356, %v420
      %v437 = vmul.f32 %v357, %v421
      %v438 = vmul.f32 %v358, %v422
      %v439 = vsub.f32 2.0, %v423
      %v440 = vsub.f32 2.0, %v424
      %v441 = vsub.f32 2.0, %v425
      %v442 = vsub.f32 2.0, %v426
      %v443 = vsub.f32 2.0, %v427
      %v444 = vsub.f32 2.0, %v428
      %v445 = vsub.f32 2.0, %v429
      %v446 = vsub.f32 2.0, %v430
      %v447 = vsub.f32 2.0, %v431
      %v448 = vsub.f32 2.0, %v432
      %v449 = vsub.f32 2.0, %v433
      %v450 = vsub.f32 2.0, %v434
      %v451 = vsub.f32 2.0, %v435
      %v452 = vsub.f32 2.0, %v436
      %v453 = vsub.f32 2.0, %v437
      %v454 = vsub.f32 2.0, %v438
      %v455 = vmul.f32 %v407, %v439
      %v456 = vmul.f32 %v408, %v440
      %v457 = vmul.f32 %v409, %v441
      %v458 = vmul.f32 %v410, %v442
      %v459 = vmul.f32 %v411, %v443
      %v460 = vmul.f32 %v412, %v444
      %v461 = vmul.f32 %v413, %v445
      %v462 = vmul.f32 %v414, %v446
      %v463 = vmul.f32 %v415, %v447
      %v464 = vmul.f32 %v416, %v448
      %v465 = vmul.f32 %v417, %v449
      %v466 = vmul.f32 %v418, %v450
      %v467 = vmul.f32 %v419, %v451
      %v468 = vmul.f32 %v420, %v452
      %v469 = vmul.f32 %v421, %v453
      %v470 = vmul.f32 %v422, %v454
      %472 = vset.pattern.permute.xlu0 32
      %473 = vperm.xlu0 %472, %v455
      %v474 = vpop.permute.xlu0 %473
      %477 = vset.pattern.permute.xlu0 32
      %478 = vperm.xlu0 %477, %v456
      %v479 = vpop.permute.xlu0 %478
      %482 = vset.pattern.permute.xlu0 32
      %483 = vperm.xlu0 %482, %v457
      %v484 = vpop.permute.xlu0 %483
      %487 = vset.pattern.permute.xlu0 32
      %488 = vperm.xlu0 %487, %v458
      %v489 = vpop.permute.xlu0 %488
      %492 = vset.pattern.permute.xlu0 32
      %493 = vperm.xlu0 %492, %v459
      %v494 = vpop.permute.xlu0 %493
      %497 = vset.pattern.permute.xlu0 32
      %498 = vperm.xlu0 %497, %v460
      %v499 = vpop.permute.xlu0 %498
      %502 = vset.pattern.permute.xlu0 32
      %503 = vperm.xlu0 %502, %v461
      %v504 = vpop.permute.xlu0 %503
      %507 = vset.pattern.permute.xlu0 32
      %508 = vperm.xlu0 %507, %v462
      %v509 = vpop.permute.xlu0 %508
      %512 = vset.pattern.permute.xlu0 32
      %513 = vperm.xlu0 %512, %v463
      %v514 = vpop.permute.xlu0 %513
      %517 = vset.pattern.permute.xlu0 32
      %518 = vperm.xlu0 %517, %v464
      %v519 = vpop.permute.xlu0 %518
      %522 = vset.pattern.permute.xlu0 32
      %523 = vperm.xlu0 %522, %v465
      %v524 = vpop.permute.xlu0 %523
      %527 = vset.pattern.permute.xlu0 32
      %528 = vperm.xlu0 %527, %v466
      %v529 = vpop.permute.xlu0 %528
      %532 = vset.pattern.permute.xlu0 32
      %533 = vperm.xlu0 %532, %v467
      %v534 = vpop.permute.xlu0 %533
      %537 = vset.pattern.permute.xlu0 32
      %538 = vperm.xlu0 %537, %v468
      %v539 = vpop.permute.xlu0 %538
      %542 = vset.pattern.permute.xlu0 32
      %543 = vperm.xlu0 %542, %v469
      %v544 = vpop.permute.xlu0 %543
      %547 = vset.pattern.permute.xlu0 32
      %548 = vperm.xlu0 %547, %v470
      %v549 = vpop.permute.xlu0 %548
      %v551 = vmul.f32 %v327, %v474
      %v552 = vmul.f32 %v328, %v479
      %v553 = vmul.f32 %v329, %v484
      %v554 = vmul.f32 %v330, %v489
      %v555 = vmul.f32 %v331, %v494
      %v556 = vmul.f32 %v332, %v499
      %v557 = vmul.f32 %v333, %v504
      %v558 = vmul.f32 %v334, %v509
      %v559 = vmul.f32 %v335, %v514
      %v560 = vmul.f32 %v336, %v519
      %v561 = vmul.f32 %v337, %v524
      %v562 = vmul.f32 %v338, %v529
      %v563 = vmul.f32 %v339, %v534
      %v564 = vmul.f32 %v340, %v539
      %v565 = vmul.f32 %v341, %v544
      %v566 = vmul.f32 %v342, %v549
      %567 = vst [vmem:[#allocation8] sm:$0xff] %v551
      %568 = vst [vmem:[#allocation8 + $0x8] sm:$0xff] %v552
      %569 = vst [vmem:[#allocation8 + $0x10] sm:$0xff] %v553
      %570 = vst [vmem:[#allocation8 + $0x18] sm:$0xff] %v554
      %571 = vst [vmem:[#allocation8 + $0x20] sm:$0xff] %v555
      %572 = vst [vmem:[#allocation8 + $0x28] sm:$0xff] %v556
      %573 = vst [vmem:[#allocation8 + $0x30] sm:$0xff] %v557
      %574 = vst [vmem:[#allocation8 + $0x38] sm:$0xff] %v558
      %575 = vst [vmem:[#allocation8 + $0x40] sm:$0xff] %v559
      %576 = vst [vmem:[#allocation8 + $0x48] sm:$0xff] %v560
      %577 = vst [vmem:[#allocation8 + $0x50] sm:$0xff] %v561
      %578 = vst [vmem:[#allocation8 + $0x58] sm:$0xff] %v562
      %579 = vst [vmem:[#allocation8 + $0x60] sm:$0xff] %v563
      %580 = vst [vmem:[#allocation8 + $0x68] sm:$0xff] %v564
      %581 = vst [vmem:[#allocation8 + $0x70] sm:$0xff] %v565
      %582 = vst [vmem:[#allocation8 + $0x78] sm:$0xff] %v566
    $region25: #{tpu_custom_call.1} parent=1 // pred_fallthru
      _
    // Predicated region
    $region26: #{tpu_custom_call.1} parent=1 // pred_check
      _
    $region27: #{tpu_custom_call.1} parent=1 // pred_check_branch
      %584 = sbr.rel (0) target = $region29
    $region28: #{tpu_custom_call.1} parent=1 // pred_region
      %s586 = ssub.s32 2048, 2048
      %587 = vsyncadd [#allocation5], %s586
      %s588 = sshll.u32 [#allocation8], 4
      %s589 = int_to_ptr.vmem [resolvable:$true] %s588
      %594 = dma.vmem_to_hbm [thread:$0]  %s589, 2048, %s2, [#allocation5], 128, 128, 8
    $region29: #{tpu_custom_call.1} parent=1 // pred_fallthru
      _
    // Predicated region
    $region30: #{tpu_custom_call.1} parent=1 // pred_check
      _
    $region31: #{tpu_custom_call.1} parent=1 // pred_check_branch
      %596 = sbr.rel (0) target = $region33
    $region32: #{tpu_custom_call.1} parent=1 // pred_region
      %597 = dma.done [#allocation5], 2048
    $region33: #{tpu_custom_call.1} parent=1 // pred_fallthru
      _
    %598 = vsyncpa [#allocation4], 1
    %599 = vsyncpa [#allocation7], 1
    %600 = vsyncpa [#allocation5], 1

</llo_original>
